<compile_context>
chip_gen: v7x
topology: tpu7x:2x2x1
jax: 0.10.0
libtpu: 0.0.40
codegen_flags: <defaults>
</compile_context>

<pallas_src>
import math

import jax
import jax.numpy as jnp
from jax.experimental import pallas as pl
from jax.experimental.pallas import tpu as pltpu


def _round_up(a: int, b: int) -> int:
    return (a + b - 1) // b * b


def _cdiv(a: int, b: int) -> int:
    return (a + b - 1) // b


def _layer_scale_kernel(x_ref, g_ref, o_ref):
    # x_ref: (tm, D) row tile; g_ref: (1, D) broadcast over rows (same dtype as x).
    o_ref[...] = x_ref[...] * g_ref[...]


# Conservative double-buffered (x-in + x-out) VMEM budget that fits every
# generation's default scoped limit (v5e 16 MiB default -> we set an explicit
# vmem_limit_bytes below; v7x physical VMEM is 64 MiB).
_VMEM_TILE_BUDGET = 24 * 1024 * 1024


def layer_scale_pallas(x, gamma, *, tm=1024, donate_x=False):
    """LayerScale forward: y = x * gamma.

    x:        (..., D)   any leading shape
    gamma:    (D,)       per-channel scale (cast to x.dtype)
    tm:       max row tile of the flattened (M, D) view per grid step.
              1024 targets >= ~85% of HBM roofline on mem-bound elementwise ops;
              it is automatically capped by the VMEM budget and by M itself.
    donate_x: alias the input HBM buffer as the output (PyTorch inplace analogue).
    """
    orig_shape = x.shape
    D = orig_shape[-1]
    assert gamma.shape == (D,), f"gamma must be ({D},), got {gamma.shape}"

    M = math.prod(orig_shape[:-1]) if len(orig_shape) > 1 else 1
    x2d = x.reshape(M, D)
    # Cast gamma to x.dtype: keeps bf16 tiles in bf16 (no f32 upcast of the whole
    # tile, half the vreg pressure) and makes the output dtype match x exactly.
    g2d = gamma.astype(x.dtype).reshape(1, D)

    itemsize = jnp.dtype(x.dtype).itemsize
    # Dtype-aware sublane multiple: 8 rows f32, 16 bf16, 32 int8/fp8.
    sublane = max(8, 32 // itemsize)

    # Tile sizing: cap by VMEM budget (double-buffered in + out), by the caller's
    # tm, and by the (sublane-rounded) row count itself.  No padding of x: the
    # grid is a ceil-div and Pallas masks the ragged last block.
    tm_vmem_cap = max(sublane, (_VMEM_TILE_BUDGET // (4 * D * itemsize)) // sublane * sublane)
    tm_eff = min(_round_up(tm, sublane), tm_vmem_cap, _round_up(M, sublane))

    # If one block would swallow a large input, split into >=2 blocks so the
    # "parallel" grid axis can shard across v7x's 2 TensorCores (no-op v5e/v6e).
    if _cdiv(M, tm_eff) == 1 and M >= 2 * sublane and M * D * itemsize >= (1 << 20):
        tm_eff = _round_up(_cdiv(M, 2), sublane)

    grid = (_cdiv(M, tm_eff),)

    # Explicit VMEM limit: double-buffered x-in + x-out tiles, double-buffered
    # gamma block, plus generous slack for compiler-internal scratch.
    vmem_limit = min(4 * tm_eff * D * itemsize + 2 * D * itemsize + (4 << 20), 48 << 20)

    out2d = pl.pallas_call(
        _layer_scale_kernel,
        out_shape=jax.ShapeDtypeStruct((M, D), x.dtype),
        grid_spec=pltpu.PrefetchScalarGridSpec(
            num_scalar_prefetch=0,
            grid=grid,
            in_specs=[
                pl.BlockSpec((tm_eff, D), lambda i: (i, 0)),  # x row tile
                pl.BlockSpec((1, D), lambda i: (0, 0)),       # gamma (constant block)
            ],
            out_specs=pl.BlockSpec((tm_eff, D), lambda i: (i, 0)),
        ),
        compiler_params=pltpu.CompilerParams(
            # Row-tile axis is independent -> lets v7x shard across its 2 TCs.
            dimension_semantics=("parallel",),
            vmem_limit_bytes=vmem_limit,
        ),
        # Advisory scheduling hint for XLA around the custom call.
        cost_estimate=pl.CostEstimate(
            flops=M * D,
            transcendentals=0,
            bytes_accessed=2 * M * D * itemsize + D * itemsize,
        ),
        input_output_aliases=({0: 0} if donate_x else {}),
    )(x2d, g2d)

    # TODO(synk): if real-world D < 128, fold k rows into lanes (reshape to
    # (M/k, k*D) with gamma tiled k times) to keep stores lane-dense.
    return out2d.reshape(orig_shape)


def layer_scale_ref(x, gamma):
    return x * gamma.astype(x.dtype)


def init_layer_scale_params(dim, init_values=1e-5, dtype=jnp.float32):
    """Matches the PyTorch module init: gamma = init_values * ones(dim)."""
    return jnp.full((dim,), init_values, dtype=dtype)


if __name__ == "__main__":
    key = jax.random.PRNGKey(0)
    kx1, kx2, kg2, kx3, kg3 = jax.random.split(key, 5)

    # --- Case 1: small shape, module-default gamma (1e-5 * ones) -------------
    B, N, dim = 2, 8, 32
    x1 = jax.random.normal(kx1, (B, N, dim), dtype=jnp.float32)
    gamma1 = init_layer_scale_params(dim)           # 1e-5 * ones(dim)

    y1 = jax.block_until_ready(layer_scale_pallas(x1, gamma1))
    y1_ref = layer_scale_ref(x1, gamma1)
    assert y1.shape == (B, N, dim)
    assert jnp.allclose(y1, y1_ref, atol=1e-6, rtol=1e-6), "case1 mismatch vs reference"

    # --- Case 2: ViT-B-like shape with ragged token count (exercises the
    #             ceil-div masked last block, lane-dense D=768) ---------------
    B2, N2, dim2 = 2, 197, 768
    x2 = jax.random.normal(kx2, (B2, N2, dim2), dtype=jnp.float32)
    gamma2 = jax.random.normal(kg2, (dim2,), dtype=jnp.float32)

    y2 = jax.block_until_ready(layer_scale_pallas(x2, gamma2))
    y2_ref = layer_scale_ref(x2, gamma2)
    assert y2.shape == (B2, N2, dim2)
    assert jnp.allclose(y2, y2_ref, atol=1e-6, rtol=1e-6), "case2 mismatch vs reference"

    # --- Case 3: bf16 activations with f32 gamma (exercises dtype-aware
    #             sublane rounding and the wrapper-side gamma cast) -----------
    B3, N3, dim3 = 2, 197, 768
    x3 = jax.random.normal(kx3, (B3, N3, dim3), dtype=jnp.bfloat16)
    gamma3 = jax.random.normal(kg3, (dim3,), dtype=jnp.float32)

    y3 = jax.block_until_ready(layer_scale_pallas(x3, gamma3))
    y3_ref = layer_scale_ref(x3, gamma3)
    assert y3.shape == (B3, N3, dim3)
    assert y3.dtype == jnp.bfloat16
    assert jnp.allclose(y3.astype(jnp.float32), y3_ref.astype(jnp.float32),
                        atol=1e-2, rtol=1e-2), "case3 mismatch vs reference"

    print("KERNEL_OK")
</pallas_src>

<mosaic_0001>
module attributes {stable_mosaic.version = 11 : i64} {
  func.func @_layer_scale_kernel(%arg0: i32, %arg1: memref<16x32xf32, #tpu.memory_space<vmem>>, %arg2: memref<1x32xf32, #tpu.memory_space<vmem>>, %arg3: memref<16x32xf32, #tpu.memory_space<vmem>>) attributes {dimension_semantics = [#tpu.dimension_semantics<parallel>], iteration_bounds = array<i64: 1>, scalar_prefetch = 0 : i64, scratch_operands = 0 : i64, tpu.core_type = #tpu.core_type<tc>, window_params = [{transform_indices = @transform_0, window_bounds = array<i64: 16, 32>}, {pipeline_mode = #tpu.pipeline_mode<synchronous>, transform_indices = @transform_1, window_bounds = array<i64: 1, 32>}, {transform_indices = @transform_2, window_bounds = array<i64: 16, 32>}]} {
    %c0 = arith.constant 0 : index
    %c0_0 = arith.constant 0 : index
    %0 = vector.load %arg1[%c0, %c0_0] : memref<16x32xf32, #tpu.memory_space<vmem>>, vector<16x32xf32>
    %c0_1 = arith.constant 0 : index
    %c0_2 = arith.constant 0 : index
    %1 = vector.load %arg2[%c0_1, %c0_2] : memref<1x32xf32, #tpu.memory_space<vmem>>, vector<1x32xf32>
    %2 = vector.broadcast %1 : vector<1x32xf32> to vector<16x32xf32>
    %3 = arith.mulf %0, %2 : vector<16x32xf32>
    %c0_3 = arith.constant 0 : index
    %c0_4 = arith.constant 0 : index
    %4 = vector.load %arg3[%c0_3, %c0_4] : memref<16x32xf32, #tpu.memory_space<vmem>>, vector<16x32xf32>
    tpu.vector_store %arg3[%c0_3, %c0_4], %3 {strides = array<i32>} : memref<16x32xf32, #tpu.memory_space<vmem>>, vector<16x32xf32>,
    return
  }
  func.func @transform_0(%arg0: i32) -> (i32, i32) {
    %c0_i32 = arith.constant 0 : i32
    %c0_i32_0 = arith.constant 0 : i32
    return %arg0, %c0_i32 : i32, i32
  }
  func.func @transform_1(%arg0: i32) -> (i32, i32) {
    %c0_i32 = arith.constant 0 : i32
    %c0_i32_0 = arith.constant 0 : i32
    %c0_i32_1 = arith.constant 0 : i32
    return %c0_i32, %c0_i32_0 : i32, i32
  }
  func.func @transform_2(%arg0: i32) -> (i32, i32) {
    %c0_i32 = arith.constant 0 : i32
    %c0_i32_0 = arith.constant 0 : i32
    return %arg0, %c0_i32 : i32, i32
  }
}

</mosaic_0001>

<llo_original>
// kernel: tpu_custom_call.1
$region0: #{tpu_custom_call.1}
  #allocation0 [shape = 'u32[]', space=smem, size = 0x4, offset = 0x4, fixed_abs, tag = 'smem constant byte address 0x4 - core index']
  #allocation1 [shape = 'u32[144,128]{1,0:T(1,128)}', space=vmem, size = 0x12000, scoped, tag = 'internal scratch']
  %s0 = inlined_call_operand.hbm [shape: f32[16,32], index: 0, kind: input, shape index: {}]
  %s1 = inlined_call_operand.vmem [shape: f32[1,32], index: 1, kind: input, shape index: {}]
  %s2 = inlined_call_operand.hbm [shape: f32[16,32], index: 2, kind: output, shape index: {}]
  %s3 = sld [smem:[#allocation0]]
  $region22: #{tpu_custom_call.1} parent=0
    _
  %s5 = ssub.s32 1, %s3
  %s6 = scalar_select 0, %s5, %s3
  $region1: #{tpu_custom_call.1} parent=0
    #allocation2 [shape = 'u8[8192]{0}', space=vmem, size = 0x2000, scoped, tag = 'input window, operand 0, single buffered']
    #allocation3 [shape = 's32[1]{0}', space=sflag, size = 0x4, scoped, tag = 'scoped memory for tpu_custom_call.1']
    #allocation4 [shape = 's32[1]{0}', space=sflag, size = 0x4, scoped, tag = 'scoped memory for tpu_custom_call.1']
    #allocation5 [shape = 'u8[8192]{0}', space=vmem, size = 0x2000, scoped, tag = 'output window, operand 0, single buffered']
    %7 = vsyncpa [#allocation3], 0
    %8 = vsyncpa [#allocation4], 0
    // Predicated region
    $region2: #{tpu_custom_call.1} parent=1 // pred_check
      _
    $region3: #{tpu_custom_call.1} parent=1 // pred_check_branch
      %10 = sbr.rel (0) target = $region5
    $region4: #{tpu_custom_call.1} parent=1 // pred_region
      %s12 = ssub.s32 256, 256
      %13 = vsyncadd [#allocation3], %s12
      %s14 = sshll.u32 [#allocation2], 4
      %s15 = int_to_ptr.vmem [resolvable:$true] %s14
      %20 = dma.hbm_to_vmem [thread:$0]  %s0, 256, %s15, [#allocation3], 128, 128, 8
    $region5: #{tpu_custom_call.1} parent=1 // pred_fallthru
      _
    // Predicated region
    $region6: #{tpu_custom_call.1} parent=1 // pred_check
      _
    $region7: #{tpu_custom_call.1} parent=1 // pred_check_branch
      %22 = sbr.rel (0) target = $region9
    $region8: #{tpu_custom_call.1} parent=1 // pred_region
      _
    $region9: #{tpu_custom_call.1} parent=1 // pred_fallthru
      _
    // Predicated region
    $region10: #{tpu_custom_call.1} parent=1 // pred_check
      _
    $region11: #{tpu_custom_call.1} parent=1 // pred_check_branch
      %24 = sbr.rel (0) target = $region13
    $region12: #{tpu_custom_call.1} parent=1 // pred_region
      %25 = dma.done [#allocation3], 256
    $region13: #{tpu_custom_call.1} parent=1 // pred_fallthru
      _
    %v26 = vld [vmem:[#allocation2] sm:$0xff]
    %v27 = vld [vmem:[#allocation2 + $0x8] sm:$0xff]
    %v28 = vld [vmem:[%s1] sm:$0x1]
    %v30 = vlaneseq
    %v31 = vshrl.u32 %v30, 7
    %v32 = vsub.s32 0, %v31
    %v33 = vrot.slane %v28, %v32
    %v35 = vmul.f32 %v26, %v33
    %v36 = vmul.f32 %v27, %v33
    %vm37 = vcmask 261120
    %38 = vst.msk [vmem:[#allocation5] sm:$0xff] %vm37, %v35
    %39 = vst.msk [vmem:[#allocation5 + $0x8] sm:$0xff] %vm37, %v36
    // Predicated region
    $region14: #{tpu_custom_call.1} parent=1 // pred_check
      _
    $region15: #{tpu_custom_call.1} parent=1 // pred_check_branch
      %41 = sbr.rel (0) target = $region17
    $region16: #{tpu_custom_call.1} parent=1 // pred_region
      %s43 = ssub.s32 256, 256
      %44 = vsyncadd [#allocation4], %s43
      %s45 = sshll.u32 [#allocation5], 4
      %s46 = int_to_ptr.vmem [resolvable:$true] %s45
      %51 = dma.vmem_to_hbm [thread:$0]  %s46, 256, %s2, [#allocation4], 128, 128, 8
    $region17: #{tpu_custom_call.1} parent=1 // pred_fallthru
      _
    // Predicated region
    $region18: #{tpu_custom_call.1} parent=1 // pred_check
      _
    $region19: #{tpu_custom_call.1} parent=1 // pred_check_branch
      %53 = sbr.rel (0) target = $region21
    $region20: #{tpu_custom_call.1} parent=1 // pred_region
      %54 = dma.done [#allocation4], 256
    $region21: #{tpu_custom_call.1} parent=1 // pred_fallthru
      _
    %55 = vsyncpa [#allocation3], 1
    %56 = vsyncpa [#allocation4], 1

</llo_original>
